<compile_context>
chip_gen: v6e
topology: v6e:2x2x1
jax: 0.10.0
libtpu: 0.0.40
codegen_flags: <defaults>
</compile_context>

<pallas_src>
import functools

import jax
import jax.numpy as jnp
from jax.experimental import pallas as pl
from jax.experimental.pallas import tpu as pltpu

HIDDEN = 256


def _round_up(x, m):
    return ((x + m - 1) // m) * m


def _device_kind():
    try:
        return jax.devices()[0].device_kind.lower()
    except Exception:
        return ""


def _default_use_mxu_l3():
    # v5e's MXU (4x128^2, ~197 TF/s) has no slack for an extra layer-3 pass;
    # keep layer 3 on the VPU/XLU there.  v6e/v7x ride the idle MXU.
    return "v5" not in _device_kind()


def _has_two_tensorcores():
    # v7x: 2 TensorCores/chip -> the "parallel" batch axis needs >= 2 grid steps.
    return "v7" in _device_kind()


def _critic_kernel(x_ref, w1_ref, b1_ref, w2_ref, b2_ref, w3t_ref, b3_ref,
                   o_ref, *, chunk, use_mxu_l3):
    # x_ref : (tile_b, S+A) f32        w1 : (S+A, 256) bf16    b1 : (1, 256) f32
    # w2    : (256, 256)  bf16         b2 : (1, 256)  f32
    # w3t   : (1, 256)    f32          b3 : (1, 1)    f32 (SMEM scalar)
    # o_ref : (1, n_chunks, chunk) f32  -- lane-dense output slab for this tile
    tile_rows = x_ref.shape[0]
    n_chunks = tile_rows // chunk

    b1 = b1_ref[...]
    b2 = b2_ref[...]
    b3 = b3_ref[0, 0]
    if use_mxu_l3:
        w3_l = w3t_ref[...].astype(jnp.bfloat16)   # (1, 256) bf16, hoisted
    else:
        w3_l = w3t_ref[...]                        # (1, 256) f32

    def body(c, carry):
        off = pl.multiple_of(c * chunk, chunk)
        # Layer 1: packed [state|action] chunk -> one MXU matmul, f32 accumulation.
        x = x_ref[pl.ds(off, chunk), :].astype(jnp.bfloat16)
        h1 = jnp.dot(x, w1_ref[...], preferred_element_type=jnp.float32) + b1
        h1 = jnp.maximum(h1, 0.0)
        # Layer 2: bf16 MXU matmul, f32 bias + ReLU on the VPU.
        h2 = jnp.dot(h1.astype(jnp.bfloat16), w2_ref[...],
                     preferred_element_type=jnp.float32) + b2
        h2 = jnp.maximum(h2, 0.0)
        # Layer 3 (out_features = 1).
        if use_mxu_l3:
            # (1,256) x (chunk,256)^T -> (1, chunk): lane-dense result straight off
            # the MXU, no sublane->lane relayout needed.
            row = jax.lax.dot_general(
                w3_l, h2.astype(jnp.bfloat16),
                dimension_numbers=(((1,), (1,)), ((), ())),
                preferred_element_type=jnp.float32)[0]          # (chunk,)
        else:
            # v5e: VPU multiply + XLU lane reduce (MXU has no slack there).
            row = jnp.sum(h2 * w3_l, axis=-1)                    # (chunk,)
        o_ref[0, c, :] = (row + b3).astype(o_ref.dtype)
        return carry

    jax.lax.fori_loop(0, n_chunks, body, 0, unroll=True)


def critic_forward(state, action, params, *, tile_b=2048, use_mxu_l3=None):
    """Fused 3-layer MLP forward. state: (B, S), action: (B, A) -> (B, 1)."""
    w1, b1, w2, b2, w3t, b3 = params
    if use_mxu_l3 is None:
        use_mxu_l3 = _default_use_mxu_l3()

    B = state.shape[0]
    # Fuse the concat in the wrapper: a (B, S+A) f32 copy is negligible HBM traffic
    # and gives a single input DMA stream + a single layer-1 matmul.
    x = jnp.concatenate(
        [state.astype(jnp.float32), action.astype(jnp.float32)], axis=1)
    F = x.shape[1]

    # Batch tile: big enough to amortize the ~0.35us/grid-step overhead, capped for
    # small batches; on v7x make sure there are >= 2 "parallel" steps (2 TCs/chip).
    tile_b = max(128, min(tile_b, _round_up(B, 128)))
    if _has_two_tensorcores() and B > 128 and _round_up(B, 128) // tile_b < 2:
        tile_b = max(128, _round_up((B + 1) // 2, 128))
    b_pad = _round_up(B, tile_b)
    if b_pad != B:
        x = jnp.pad(x, ((0, b_pad - B), (0, 0)))

    # In-kernel batch sub-chunking: 128-256 rows so h1/h2 stay near the vreg file.
    chunk = 256 if tile_b % 256 == 0 else 128
    n_chunks = tile_b // chunk
    num_tiles = b_pad // tile_b

    kernel = functools.partial(_critic_kernel, chunk=chunk, use_mxu_l3=use_mxu_l3)

    # Weights/biases: full-array blocks with constant index_map -> VMEM-resident.
    def resident(arr):
        return pl.BlockSpec(arr.shape, lambda i: (0, 0))

    H = w2.shape[0]
    flops = 2 * b_pad * (F * H + H * H + H)
    bytes_accessed = ((x.size + b_pad) * 4
                      + (w1.size + w2.size) * 2
                      + (b1.size + b2.size + w3t.size + b3.size) * 4)

    out = pl.pallas_call(
        kernel,
        out_shape=jax.ShapeDtypeStruct((num_tiles, n_chunks, chunk), jnp.float32),
        grid=(num_tiles,),
        in_specs=[
            pl.BlockSpec((tile_b, F), lambda i: (i, 0)),        # packed input tile
            resident(w1),
            resident(b1),
            resident(w2),
            resident(b2),
            resident(w3t),
            pl.BlockSpec(memory_space=pltpu.MemorySpace.SMEM),  # b3 scalar
        ],
        # Lane-dense output slab: last two block dims equal the full array dims.
        out_specs=pl.BlockSpec((1, n_chunks, chunk), lambda i: (i, 0, 0)),
        compiler_params=pltpu.CompilerParams(
            dimension_semantics=("parallel",)),
        cost_estimate=pl.CostEstimate(
            flops=flops, transcendentals=0, bytes_accessed=bytes_accessed),
    )(x, w1, b1, w2, b2, w3t, b3)

    # (num_tiles, n_chunks, chunk) flattens row-major to batch order.
    return out.reshape(b_pad)[:B].reshape(B, 1)


def init_critic_params(key, state_space, action_space, hidden=HIDDEN):
    """PyTorch nn.Linear-style init (U(-1/sqrt(fan_in), 1/sqrt(fan_in))),
    repacked into the kernel-friendly layout."""
    def linear(key, fan_in, fan_out):
        kw, kb = jax.random.split(key)
        bound = 1.0 / jnp.sqrt(jnp.float32(fan_in))
        w = jax.random.uniform(kw, (fan_in, fan_out), jnp.float32, -bound, bound)
        b = jax.random.uniform(kb, (1, fan_out), jnp.float32, -bound, bound)
        return w, b

    k1, k2, k3 = jax.random.split(key, 3)
    w1, b1 = linear(k1, state_space + action_space, hidden)
    w2, b2 = linear(k2, hidden, hidden)
    w3, b3 = linear(k3, hidden, 1)

    w1 = w1.astype(jnp.bfloat16)                 # (S+A, 256) for the fused concat input
    w2 = w2.astype(jnp.bfloat16)
    w3t = w3.T.astype(jnp.float32)               # (1, 256)
    b3 = b3.reshape(1, 1).astype(jnp.float32)    # SMEM scalar
    return (w1, b1, w2, b2, w3t, b3)


def critic_reference(state, action, params, *, use_mxu_l3=None):
    """Pure-JAX reference performing the same math as the kernel (bf16 MXU inputs)."""
    if use_mxu_l3 is None:
        use_mxu_l3 = _default_use_mxu_l3()
    w1, b1, w2, b2, w3t, b3 = params
    x = jnp.concatenate(
        [state.astype(jnp.float32), action.astype(jnp.float32)], axis=1)
    h1 = jnp.dot(x.astype(jnp.bfloat16), w1,
                 preferred_element_type=jnp.float32) + b1
    h1 = jnp.maximum(h1, 0.0)
    h2 = jnp.dot(h1.astype(jnp.bfloat16), w2,
                 preferred_element_type=jnp.float32) + b2
    h2 = jnp.maximum(h2, 0.0)
    if use_mxu_l3:
        y = jnp.dot(h2.astype(jnp.bfloat16), w3t.astype(jnp.bfloat16).T,
                    preferred_element_type=jnp.float32)
    else:
        y = jnp.sum(h2 * w3t, axis=-1, keepdims=True)
    return y + b3[0, 0]


if __name__ == "__main__":
    key = jax.random.PRNGKey(0)
    k_params, k_state, k_action = jax.random.split(key, 3)

    batch = 2
    state_space = 8
    action_space = 4

    params = init_critic_params(k_params, state_space, action_space)
    state = jax.random.normal(k_state, (batch, state_space), jnp.float32)
    action = jax.random.normal(k_action, (batch, action_space), jnp.float32)

    out = critic_forward(state, action, params)
    out = jax.block_until_ready(out)

    ref = critic_reference(state, action, params)
    assert out.shape == (batch, 1), out.shape
    assert jnp.allclose(out, ref, atol=2e-3, rtol=2e-3), (out, ref)

    print("KERNEL_OK")
</pallas_src>

<mosaic_0001>
module attributes {stable_mosaic.version = 11 : i64} {
  func.func @_critic_kernel(%arg0: i32, %arg1: memref<128x12xf32, #tpu.memory_space<vmem>>, %arg2: memref<12x256xbf16, #tpu.memory_space<vmem>>, %arg3: memref<1x256xf32, #tpu.memory_space<vmem>>, %arg4: memref<256x256xbf16, #tpu.memory_space<vmem>>, %arg5: memref<1x256xf32, #tpu.memory_space<vmem>>, %arg6: memref<1x256xf32, #tpu.memory_space<vmem>>, %arg7: memref<1x1xf32, #tpu.memory_space<smem>>, %arg8: memref<1x1x128xf32, #tpu.memory_space<vmem>>) attributes {dimension_semantics = [#tpu.dimension_semantics<parallel>], iteration_bounds = array<i64: 1>, scalar_prefetch = 0 : i64, scratch_operands = 0 : i64, tpu.core_type = #tpu.core_type<tc>, window_params = [{transform_indices = @transform_0, window_bounds = array<i64: 128, 12>}, {pipeline_mode = #tpu.pipeline_mode<synchronous>, transform_indices = @transform_1, window_bounds = array<i64: 12, 256>}, {pipeline_mode = #tpu.pipeline_mode<synchronous>, transform_indices = @transform_2, window_bounds = array<i64: 1, 256>}, {pipeline_mode = #tpu.pipeline_mode<synchronous>, transform_indices = @transform_3, window_bounds = array<i64: 256, 256>}, {pipeline_mode = #tpu.pipeline_mode<synchronous>, transform_indices = @transform_4, window_bounds = array<i64: 1, 256>}, {pipeline_mode = #tpu.pipeline_mode<synchronous>, transform_indices = @transform_5, window_bounds = array<i64: 1, 256>}, {transform_indices = @transform_6, window_bounds = array<i64: 1, 1>}, {transform_indices = @transform_7, window_bounds = array<i64: 1, 1, 128>}]} {
    %c0 = arith.constant 0 : index
    %c0_0 = arith.constant 0 : index
    %0 = vector.load %arg3[%c0, %c0_0] : memref<1x256xf32, #tpu.memory_space<vmem>>, vector<1x256xf32>
    %c0_1 = arith.constant 0 : index
    %c0_2 = arith.constant 0 : index
    %1 = vector.load %arg5[%c0_1, %c0_2] : memref<1x256xf32, #tpu.memory_space<vmem>>, vector<1x256xf32>
    %c0_3 = arith.constant 0 : index
    %c0_4 = arith.constant 0 : index
    %2 = memref.load %arg7[%c0_3, %c0_4] : memref<1x1xf32, #tpu.memory_space<smem>>
    %c0_5 = arith.constant 0 : index
    %c0_6 = arith.constant 0 : index
    %3 = vector.load %arg6[%c0_5, %c0_6] : memref<1x256xf32, #tpu.memory_space<vmem>>, vector<1x256xf32>
    %4 = arith.truncf %3 : vector<1x256xf32> to vector<1x256xbf16>
    %c0_i32 = arith.constant 0 : i32
    %c128_i32 = arith.constant 128 : i32
    %5 = arith.muli %c0_i32, %c128_i32 : i32
    %6 = tpu.assume_multiple %5, 128 : i32
    %7 = arith.index_cast %6 : i32 to index
    %c0_7 = arith.constant 0 : index
    %8 = vector.load %arg1[%7, %c0_7] : memref<128x12xf32, #tpu.memory_space<vmem>>, vector<128x12xf32>
    %9 = arith.truncf %8 : vector<128x12xf32> to vector<128x12xbf16>
    %c0_8 = arith.constant 0 : index
    %c0_9 = arith.constant 0 : index
    %10 = vector.load %arg2[%c0_8, %c0_9] : memref<12x256xbf16, #tpu.memory_space<vmem>>, vector<12x256xbf16>
    %cst = arith.constant dense<0.000000e+00> : vector<128x256xf32>
    %11 = tpu.matmul %9, %10, %cst {dimension_numbers = #tpu.dot_dimension_numbers<[1], [0], [0], [1], [0, 0, 1, 1], [], []>} : vector<128x12xbf16>, vector<12x256xbf16>, vector<128x256xf32> -> vector<128x256xf32>
    %12 = vector.broadcast %0 : vector<1x256xf32> to vector<128x256xf32>
    %13 = arith.addf %11, %12 : vector<128x256xf32>
    %cst_10 = arith.constant 0.000000e+00 : f32
    %14 = vector.broadcast %cst_10 : f32 to vector<128x256xf32>
    %15 = arith.maximumf %13, %14 : vector<128x256xf32>
    %16 = arith.truncf %15 : vector<128x256xf32> to vector<128x256xbf16>
    %c0_11 = arith.constant 0 : index
    %c0_12 = arith.constant 0 : index
    %17 = vector.load %arg4[%c0_11, %c0_12] : memref<256x256xbf16, #tpu.memory_space<vmem>>, vector<256x256xbf16>
    %cst_13 = arith.constant dense<0.000000e+00> : vector<128x256xf32>
    %18 = tpu.matmul %16, %17, %cst_13 {dimension_numbers = #tpu.dot_dimension_numbers<[1], [0], [0], [1], [0, 0, 1, 1], [], []>} : vector<128x256xbf16>, vector<256x256xbf16>, vector<128x256xf32> -> vector<128x256xf32>
    %19 = vector.broadcast %1 : vector<1x256xf32> to vector<128x256xf32>
    %20 = arith.addf %18, %19 : vector<128x256xf32>
    %cst_14 = arith.constant 0.000000e+00 : f32
    %21 = vector.broadcast %cst_14 : f32 to vector<128x256xf32>
    %22 = arith.maximumf %20, %21 : vector<128x256xf32>
    %23 = arith.truncf %22 : vector<128x256xf32> to vector<128x256xbf16>
    %cst_15 = arith.constant dense<0.000000e+00> : vector<1x128xf32>
    %24 = tpu.matmul %4, %23, %cst_15 {dimension_numbers = #tpu.dot_dimension_numbers<[1], [1], [0], [0], [0, 0, 1, 0], [], []>} : vector<1x256xbf16>, vector<128x256xbf16>, vector<1x128xf32> -> vector<1x128xf32>
    %25 = vector.shape_cast %24 : vector<1x128xf32> to vector<128xf32>
    %26 = vector.broadcast %2 : f32 to vector<128xf32>
    %27 = arith.addf %25, %26 : vector<128xf32>
    %c0_16 = arith.constant 0 : index
    %28 = arith.index_cast %c0_i32 : i32 to index
    %c0_17 = arith.constant 0 : index
    %29 = vector.load %arg8[%c0_16, %28, %c0_17] : memref<1x1x128xf32, #tpu.memory_space<vmem>>, vector<1x1x128xf32>
    %30 = vector.shape_cast %29 : vector<1x1x128xf32> to vector<128xf32>
    %31 = vector.shape_cast %27 : vector<128xf32> to vector<1x1x128xf32>
    tpu.vector_store %arg8[%c0_16, %28, %c0_17], %31 {strides = array<i32>} : memref<1x1x128xf32, #tpu.memory_space<vmem>>, vector<1x1x128xf32>,
    %c1_i32 = arith.constant 1 : i32
    return
  }
  func.func @transform_0(%arg0: i32) -> (i32, i32) {
    %c0_i32 = arith.constant 0 : i32
    %c0_i32_0 = arith.constant 0 : i32
    return %arg0, %c0_i32 : i32, i32
  }
  func.func @transform_1(%arg0: i32) -> (i32, i32) {
    %c0_i32 = arith.constant 0 : i32
    %c0_i32_0 = arith.constant 0 : i32
    %c0_i32_1 = arith.constant 0 : i32
    return %c0_i32, %c0_i32_0 : i32, i32
  }
  func.func @transform_2(%arg0: i32) -> (i32, i32) {
    %c0_i32 = arith.constant 0 : i32
    %c0_i32_0 = arith.constant 0 : i32
    %c0_i32_1 = arith.constant 0 : i32
    return %c0_i32, %c0_i32_0 : i32, i32
  }
  func.func @transform_3(%arg0: i32) -> (i32, i32) {
    %c0_i32 = arith.constant 0 : i32
    %c0_i32_0 = arith.constant 0 : i32
    %c0_i32_1 = arith.constant 0 : i32
    return %c0_i32, %c0_i32_0 : i32, i32
  }
  func.func @transform_4(%arg0: i32) -> (i32, i32) {
    %c0_i32 = arith.constant 0 : i32
    %c0_i32_0 = arith.constant 0 : i32
    %c0_i32_1 = arith.constant 0 : i32
    return %c0_i32, %c0_i32_0 : i32, i32
  }
  func.func @transform_5(%arg0: i32) -> (i32, i32) {
    %c0_i32 = arith.constant 0 : i32
    %c0_i32_0 = arith.constant 0 : i32
    %c0_i32_1 = arith.constant 0 : i32
    return %c0_i32, %c0_i32_0 : i32, i32
  }
  func.func @transform_6(%arg0: i32) -> (i32, i32) {
    %c0_i32 = arith.constant 0 : i32
    %c0_i32_0 = arith.constant 0 : i32
    %c0_i32_1 = arith.constant 0 : i32
    return %c0_i32, %c0_i32_0 : i32, i32
  }
  func.func @transform_7(%arg0: i32) -> (i32, i32, i32) {
    %c0_i32 = arith.constant 0 : i32
    %c0_i32_0 = arith.constant 0 : i32
    %c0_i32_1 = arith.constant 0 : i32
    return %arg0, %c0_i32, %c0_i32_0 : i32, i32, i32
  }
}

</mosaic_0001>

<llo_original>
// kernel: tpu_custom_call.1
$region0: #{tpu_custom_call.1}
  #allocation0 [shape = 'u32[]', space=smem, size = 0x4, offset = 0x4, fixed_abs, tag = 'smem constant byte address 0x4 - core index']
  #allocation1 [shape = 'u32[144,128]{1,0:T(1,128)}', space=vmem, size = 0x12000, scoped, tag = 'internal scratch']
  #allocation2 [shape = 'f32[1,1]{1,0:T(1,128)S(6)}', space=smem, size = 0x200, scoped, tag = 'scoped memory for tpu_custom_call.1']
  %s0 = inlined_call_operand.vmem [shape: f32[128,12], index: 0, kind: input, shape index: {}]
  %s1 = inlined_call_operand.vmem [shape: bf16[12,256], index: 1, kind: input, shape index: {}]
  %s2 = inlined_call_operand.vmem [shape: f32[1,256], index: 2, kind: input, shape index: {}]
  %s3 = inlined_call_operand.hbm [shape: bf16[256,256], index: 3, kind: input, shape index: {}]
  %s4 = inlined_call_operand.vmem [shape: f32[1,256], index: 4, kind: input, shape index: {}]
  %s5 = inlined_call_operand.vmem [shape: f32[1,256], index: 5, kind: input, shape index: {}]
  %s6 = inlined_call_operand.<no memory space> [shape: f32[1,1], index: 6, kind: input, shape index: {}]
  %s7 = inlined_call_operand.hbm [shape: f32[1,1,128], index: 7, kind: output, shape index: {}]
  %s8 = sld [smem:[#allocation0]]
  $region42: #{tpu_custom_call.1} parent=0
    _
  %s10 = ssub.s32 1, %s8
  %s11 = scalar_select 0, %s10, %s8
  %12 = sst [smem:[#allocation2]] %s6
  $region1: #{tpu_custom_call.1} parent=0
    #allocation3 [shape = 'u8[131072]{0}', space=vmem, size = 0x20000, scoped, tag = 'input window, operand 3, single buffered']
    #allocation4 [shape = 's32[1]{0}', space=sflag, size = 0x4, scoped, tag = 'scoped memory for tpu_custom_call.1']
    #allocation5 [shape = 's32[1]{0}', space=sflag, size = 0x4, scoped, tag = 'scoped memory for tpu_custom_call.1']
    #allocation6 [shape = 'u8[512]{0}', space=vmem, size = 0x400, scoped, tag = 'output window, operand 0, single buffered']
    %13 = vsyncpa [#allocation4], 0
    %14 = vsyncpa [#allocation5], 0
    // Predicated region
    $region2: #{tpu_custom_call.1} parent=1 // pred_check
      _
    $region3: #{tpu_custom_call.1} parent=1 // pred_check_branch
      %16 = sbr.rel (0) target = $region5
    $region4: #{tpu_custom_call.1} parent=1 // pred_region
      _
    $region5: #{tpu_custom_call.1} parent=1 // pred_fallthru
      _
    // Predicated region
    $region6: #{tpu_custom_call.1} parent=1 // pred_check
      _
    $region7: #{tpu_custom_call.1} parent=1 // pred_check_branch
      %18 = sbr.rel (0) target = $region9
    $region8: #{tpu_custom_call.1} parent=1 // pred_region
      _
    $region9: #{tpu_custom_call.1} parent=1 // pred_fallthru
      _
    // Predicated region
    $region10: #{tpu_custom_call.1} parent=1 // pred_check
      _
    $region11: #{tpu_custom_call.1} parent=1 // pred_check_branch
      %20 = sbr.rel (0) target = $region13
    $region12: #{tpu_custom_call.1} parent=1 // pred_region
      _
    $region13: #{tpu_custom_call.1} parent=1 // pred_fallthru
      _
    // Predicated region
    $region14: #{tpu_custom_call.1} parent=1 // pred_check
      _
    $region15: #{tpu_custom_call.1} parent=1 // pred_check_branch
      %22 = sbr.rel (0) target = $region17
    $region16: #{tpu_custom_call.1} parent=1 // pred_region
      %s24 = ssub.s32 4096, 4096
      %25 = vsyncadd [#allocation4], %s24
      %s26 = sshll.u32 [#allocation3], 4
      %s27 = int_to_ptr.vmem [resolvable:$true] %s26
      %32 = dma.hbm_to_vmem [thread:$0]  %s3, 4096, %s27, [#allocation4], 128, 128, 8
    $region17: #{tpu_custom_call.1} parent=1 // pred_fallthru
      _
    // Predicated region
    $region18: #{tpu_custom_call.1} parent=1 // pred_check
      _
    $region19: #{tpu_custom_call.1} parent=1 // pred_check_branch
      %34 = sbr.rel (0) target = $region21
    $region20: #{tpu_custom_call.1} parent=1 // pred_region
      _
    $region21: #{tpu_custom_call.1} parent=1 // pred_fallthru
      _
    // Predicated region
    $region22: #{tpu_custom_call.1} parent=1 // pred_check
      _
    $region23: #{tpu_custom_call.1} parent=1 // pred_check_branch
      %36 = sbr.rel (0) target = $region25
    $region24: #{tpu_custom_call.1} parent=1 // pred_region
      _
    $region25: #{tpu_custom_call.1} parent=1 // pred_fallthru
      _
    // Predicated region
    $region26: #{tpu_custom_call.1} parent=1 // pred_check
      _
    $region27: #{tpu_custom_call.1} parent=1 // pred_check_branch
      %38 = sbr.rel (0) target = $region29
    $region28: #{tpu_custom_call.1} parent=1 // pred_region
      _
    $region29: #{tpu_custom_call.1} parent=1 // pred_fallthru
      _
    // Predicated region
    $region30: #{tpu_custom_call.1} parent=1 // pred_check
      _
    $region31: #{tpu_custom_call.1} parent=1 // pred_check_branch
      %40 = sbr.rel (0) target = $region33
    $region32: #{tpu_custom_call.1} parent=1 // pred_region
      %41 = dma.done [#allocation4], 4096
    $region33: #{tpu_custom_call.1} parent=1 // pred_fallthru
      _
    %v43 = vld [vmem:[%s2] sm:$0x3]
    %v44 = vld [vmem:[%s4] sm:$0x3]
    %s45 = sld [smem:[#allocation2]]
    %v46 = vld [vmem:[%s5] sm:$0x3]
    %v48 = vlaneseq
    %v49 = vshrl.u32 %v48, 7
    %v50 = vsub.s32 0, %v49
    %v51 = vrot.slane %v46, %v50
    %v52 = vlaneseq
    %v53 = vshrl.u32 %v52, 7
    %v54 = vsub.s32 1, %v53
    %v55 = vrot.slane %v46, %v54
    %v58 = vpack.c.bf16 %v51, %v51
    %v59 = vpack.c.bf16 %v55, %v55
    %v60 = vld [vmem:[%s0] sm:$0xff]
    %v61 = vld [vmem:[%s0 + $0x8] sm:$0xff]
    %v62 = vld [vmem:[%s0 + $0x10] sm:$0xff]
    %v63 = vld [vmem:[%s0 + $0x18] sm:$0xff]
    %v64 = vld [vmem:[%s0 + $0x20] sm:$0xff]
    %v65 = vld [vmem:[%s0 + $0x28] sm:$0xff]
    %v66 = vld [vmem:[%s0 + $0x30] sm:$0xff]
    %v67 = vld [vmem:[%s0 + $0x38] sm:$0xff]
    %v68 = vld [vmem:[%s0 + $0x40] sm:$0xff]
    %v69 = vld [vmem:[%s0 + $0x48] sm:$0xff]
    %v70 = vld [vmem:[%s0 + $0x50] sm:$0xff]
    %v71 = vld [vmem:[%s0 + $0x58] sm:$0xff]
    %v72 = vld [vmem:[%s0 + $0x60] sm:$0xff]
    %v73 = vld [vmem:[%s0 + $0x68] sm:$0xff]
    %v74 = vld [vmem:[%s0 + $0x70] sm:$0xff]
    %v75 = vld [vmem:[%s0 + $0x78] sm:$0xff]
    %v76 = vpack.c.bf16 %v61, %v60
    %v77 = vpack.c.bf16 %v63, %v62
    %v78 = vpack.c.bf16 %v65, %v64
    %v79 = vpack.c.bf16 %v67, %v66
    %v80 = vpack.c.bf16 %v69, %v68
    %v81 = vpack.c.bf16 %v71, %v70
    %v82 = vpack.c.bf16 %v73, %v72
    %v83 = vpack.c.bf16 %v75, %v74
    %v84 = vld [vmem:[%s1] sm:$0xff]
    %v85 = vld [vmem:[%s1 + $0x8] sm:$0x33]
    %v87 = vlaneseq
    %v88 = vshrl.u32 %v87, 7
    %v89 = vsub.s32 0, %v88
    %v90 = vrot.slane %v43, %v89
    %v91 = vlaneseq
    %v92 = vshrl.u32 %v91, 7
    %v93 = vsub.s32 1, %v92
    %v94 = vrot.slane %v43, %v93
    %v99 = vunpack.c.l.b16 %v84
    %v100 = vunpack.c.h.b16 %v84
    %v101 = vunpack.c.l.b16 %v85
    %v102 = vunpack.c.h.b16 %v85
    %v103 = vpack.c.b16 %v101, %v99
    %v104 = vpack.c.b16 %v102, %v100
    %vm105 = vcmask 97280
    %v107 = vsel %vm105, %v76, 0
    %v110 = vsel %vm105, %v77, 0
    %v113 = vsel %vm105, %v78, 0
    %v116 = vsel %vm105, %v79, 0
    %v119 = vsel %vm105, %v80, 0
    %v122 = vsel %vm105, %v81, 0
    %v125 = vsel %vm105, %v82, 0
    %v128 = vsel %vm105, %v83, 0
    %vm130 = vcmask 1045504
    %v132 = vsel %vm130, %v103, 0
    %v135 = vsel %vm130, %v104, 0
    %137 = vmatprep.subr.bf16.mxu0 0
    %138 = vmatpush1.bf16.msra.mxu0 0
    %139 = vmatprep.subr.bf16.mxu0 0
    %140 = vmatpush1.bf16.msra.mxu0 0
    %141 = vmatprep.subr.bf16.mxu0 0
    %142 = vmatpush1.bf16.msra.mxu0 0
    %143 = vmatprep.subr.bf16.mxu0 0
    %144 = vmatpush1.bf16.msra.mxu0 0
    %145 = vmatprep.subr.bf16.mxu0 0
    %146 = vmatpush1.bf16.msra.mxu0 0
    %147 = vmatprep.subr.bf16.mxu0 0
    %148 = vmatpush1.bf16.msra.mxu0 0
    %149 = vmatprep.subr.bf16.mxu0 0
    %150 = vmatpush1.bf16.msra.mxu0 0
    %151 = vmatprep.subr.bf16.mxu0 %v135
    %152 = vmatpush1.bf16.msra.mxu0 %v132
    %153 = vmatprep.subr.bf16.mxu0 0
    %154 = vmatpush2.bf16.msra.mxu0 0
    %155 = vmatprep.subr.bf16.mxu0 0
    %156 = vmatpush2.bf16.msra.mxu0 0
    %157 = vmatprep.subr.bf16.mxu0 0
    %158 = vmatpush2.bf16.msra.mxu0 0
    %159 = vmatprep.subr.bf16.mxu0 0
    %160 = vmatpush2.bf16.msra.mxu0 0
    %161 = vmatprep.subr.bf16.mxu0 0
    %162 = vmatpush2.bf16.msra.mxu0 0
    %163 = vmatprep.subr.bf16.mxu0 0
    %164 = vmatpush2.bf16.msra.mxu0 0
    %165 = vmatprep.subr.bf16.mxu0 0
    %166 = vmatpush2.bf16.msra.mxu0 0
    %167 = vmatprep.subr.bf16.mxu0 0
    %168 = vmatpush2.bf16.msra.mxu0 0
    %169 = vmatprep.mubr.bf16.mxu0 0
    %170 = vmatmul.mubr.bf16.gmra.mxu0 %v107
    %v171 = vpop.f32.mrf.mxu0
    %v172 = vadd.f32 %v90, %v171
    %v173 = vpop.f32.mrf.mxu0
    %v174 = vadd.f32 %v94, %v173
    %v175 = vpop.f32.mrf.mxu0
    %v176 = vadd.f32 %v90, %v175
    %v177 = vpop.f32.mrf.mxu0
    %v178 = vadd.f32 %v94, %v177
    %179 = vmatprep.mubr.bf16.mxu0 0
    %180 = vmatmul.mubr.bf16.gmra.mxu0 %v110
    %v181 = vpop.f32.mrf.mxu0
    %v182 = vadd.f32 %v90, %v181
    %v183 = vpop.f32.mrf.mxu0
    %v184 = vadd.f32 %v94, %v183
    %v185 = vpop.f32.mrf.mxu0
    %v186 = vadd.f32 %v90, %v185
    %v187 = vpop.f32.mrf.mxu0
    %v188 = vadd.f32 %v94, %v187
    %189 = vmatprep.mubr.bf16.mxu0 0
    %190 = vmatmul.mubr.bf16.gmra.mxu0 %v113
    %v191 = vpop.f32.mrf.mxu0
    %v192 = vadd.f32 %v90, %v191
    %v193 = vpop.f32.mrf.mxu0
    %v194 = vadd.f32 %v94, %v193
    %v195 = vpop.f32.mrf.mxu0
    %v196 = vadd.f32 %v90, %v195
    %v197 = vpop.f32.mrf.mxu0
    %v198 = vadd.f32 %v94, %v197
    %199 = vmatprep.mubr.bf16.mxu0 0
    %200 = vmatmul.mubr.bf16.gmra.mxu0 %v116
    %v201 = vpop.f32.mrf.mxu0
    %v202 = vadd.f32 %v90, %v201
    %v203 = vpop.f32.mrf.mxu0
    %v204 = vadd.f32 %v94, %v203
    %v205 = vpop.f32.mrf.mxu0
    %v206 = vadd.f32 %v90, %v205
    %v207 = vpop.f32.mrf.mxu0
    %v208 = vadd.f32 %v94, %v207
    %209 = vmatprep.mubr.bf16.mxu0 0
    %210 = vmatmul.mubr.bf16.gmra.mxu0 %v119
    %v211 = vpop.f32.mrf.mxu0
    %v212 = vadd.f32 %v90, %v211
    %v213 = vpop.f32.mrf.mxu0
    %v214 = vadd.f32 %v94, %v213
    %v215 = vpop.f32.mrf.mxu0
    %v216 = vadd.f32 %v90, %v215
    %v217 = vpop.f32.mrf.mxu0
    %v218 = vadd.f32 %v94, %v217
    %219 = vmatprep.mubr.bf16.mxu0 0
    %220 = vmatmul.mubr.bf16.gmra.mxu0 %v122
    %v221 = vpop.f32.mrf.mxu0
    %v222 = vadd.f32 %v90, %v221
    %v223 = vpop.f32.mrf.mxu0
    %v224 = vadd.f32 %v94, %v223
    %v225 = vpop.f32.mrf.mxu0
    %v226 = vadd.f32 %v90, %v225
    %v227 = vpop.f32.mrf.mxu0
    %v228 = vadd.f32 %v94, %v227
    %229 = vmatprep.mubr.bf16.mxu0 0
    %230 = vmatmul.mubr.bf16.gmra.mxu0 %v125
    %v231 = vpop.f32.mrf.mxu0
    %v232 = vadd.f32 %v90, %v231
    %v233 = vpop.f32.mrf.mxu0
    %v234 = vadd.f32 %v94, %v233
    %v235 = vpop.f32.mrf.mxu0
    %v236 = vadd.f32 %v90, %v235
    %v237 = vpop.f32.mrf.mxu0
    %v238 = vadd.f32 %v94, %v237
    %239 = vmatprep.mubr.bf16.mxu0 0
    %240 = vmatmul.mubr.bf16.gmra.mxu0 %v128
    %v241 = vpop.f32.mrf.mxu0
    %v242 = vadd.f32 %v90, %v241
    %v243 = vpop.f32.mrf.mxu0
    %v244 = vadd.f32 %v94, %v243
    %v245 = vpop.f32.mrf.mxu0
    %v246 = vadd.f32 %v90, %v245
    %v247 = vpop.f32.mrf.mxu0
    %v248 = vadd.f32 %v94, %v247
    %249 = vdwg.mxu0
    %v250 = vmax.f32 %v172, 0.0
    %v251 = vmax.f32 %v174, 0.0
    %v252 = vmax.f32 %v176, 0.0
    %v253 = vmax.f32 %v178, 0.0
    %v254 = vmax.f32 %v182, 0.0
    %v255 = vmax.f32 %v184, 0.0
    %v256 = vmax.f32 %v186, 0.0
    %v257 = vmax.f32 %v188, 0.0
    %v258 = vmax.f32 %v192, 0.0
    %v259 = vmax.f32 %v194, 0.0
    %v260 = vmax.f32 %v196, 0.0
    %v261 = vmax.f32 %v198, 0.0
    %v262 = vmax.f32 %v202, 0.0
    %v263 = vmax.f32 %v204, 0.0
    %v264 = vmax.f32 %v206, 0.0
    %v265 = vmax.f32 %v208, 0.0
    %v266 = vmax.f32 %v212, 0.0
    %v267 = vmax.f32 %v214, 0.0
    %v268 = vmax.f32 %v216, 0.0
    %v269 = vmax.f32 %v218, 0.0
    %v270 = vmax.f32 %v222, 0.0
    %v271 = vmax.f32 %v224, 0.0
    %v272 = vmax.f32 %v226, 0.0
    %v273 = vmax.f32 %v228, 0.0
    %v274 = vmax.f32 %v232, 0.0
    %v275 = vmax.f32 %v234, 0.0
    %v276 = vmax.f32 %v236, 0.0
    %v277 = vmax.f32 %v238, 0.0
    %v278 = vmax.f32 %v242, 0.0
    %v279 = vmax.f32 %v244, 0.0
    %v280 = vmax.f32 %v246, 0.0
    %v281 = vmax.f32 %v248, 0.0
    %v282 = vpack.c.bf16 %v252, %v250
    %v283 = vpack.c.bf16 %v253, %v251
    %v284 = vpack.c.bf16 %v256, %v254
    %v285 = vpack.c.bf16 %v257, %v255
    %v286 = vpack.c.bf16 %v260, %v258
    %v287 = vpack.c.bf16 %v261, %v259
    %v288 = vpack.c.bf16 %v264, %v262
    %v289 = vpack.c.bf16 %v265, %v263
    %v290 = vpack.c.bf16 %v268, %v266
    %v291 = vpack.c.bf16 %v269, %v267
    %v292 = vpack.c.bf16 %v272, %v270
    %v293 = vpack.c.bf16 %v273, %v271
    %v294 = vpack.c.bf16 %v276, %v274
    %v295 = vpack.c.bf16 %v277, %v275
    %v296 = vpack.c.bf16 %v280, %v278
    %v297 = vpack.c.bf16 %v281, %v279
    %v298 = vld [vmem:[#allocation3] sm:$0xff]
    %v299 = vld [vmem:[#allocation3 + $0x8] sm:$0xff]
    %v300 = vld [vmem:[#allocation3 + $0x10] sm:$0xff]
    %v301 = vld [vmem:[#allocation3 + $0x18] sm:$0xff]
    %v302 = vld [vmem:[#allocation3 + $0x20] sm:$0xff]
    %v303 = vld [vmem:[#allocation3 + $0x28] sm:$0xff]
    %v304 = vld [vmem:[#allocation3 + $0x30] sm:$0xff]
    %v305 = vld [vmem:[#allocation3 + $0x38] sm:$0xff]
    %v306 = vld [vmem:[#allocation3 + $0x40] sm:$0xff]
    %v307 = vld [vmem:[#allocation3 + $0x48] sm:$0xff]
    %v308 = vld [vmem:[#allocation3 + $0x50] sm:$0xff]
    %v309 = vld [vmem:[#allocation3 + $0x58] sm:$0xff]
    %v310 = vld [vmem:[#allocation3 + $0x60] sm:$0xff]
    %v311 = vld [vmem:[#allocation3 + $0x68] sm:$0xff]
    %v312 = vld [vmem:[#allocation3 + $0x70] sm:$0xff]
    %v313 = vld [vmem:[#allocation3 + $0x78] sm:$0xff]
    %v314 = vld [vmem:[#allocation3 + $0x80] sm:$0xff]
    %v315 = vld [vmem:[#allocation3 + $0x88] sm:$0xff]
    %v316 = vld [vmem:[#allocation3 + $0x90] sm:$0xff]
    %v317 = vld [vmem:[#allocation3 + $0x98] sm:$0xff]
    %v318 = vld [vmem:[#allocation3 + $0xa0] sm:$0xff]
    %v319 = vld [vmem:[#allocation3 + $0xa8] sm:$0xff]
    %v320 = vld [vmem:[#allocation3 + $0xb0] sm:$0xff]
    %v321 = vld [vmem:[#allocation3 + $0xb8] sm:$0xff]
    %v322 = vld [vmem:[#allocation3 + $0xc0] sm:$0xff]
    %v323 = vld [vmem:[#allocation3 + $0xc8] sm:$0xff]
    %v324 = vld [vmem:[#allocation3 + $0xd0] sm:$0xff]
    %v325 = vld [vmem:[#allocation3 + $0xd8] sm:$0xff]
    %v326 = vld [vmem:[#allocation3 + $0xe0] sm:$0xff]
    %v327 = vld [vmem:[#allocation3 + $0xe8] sm:$0xff]
    %v328 = vld [vmem:[#allocation3 + $0xf0] sm:$0xff]
    %v329 = vld [vmem:[#allocation3 + $0xf8] sm:$0xff]
    %v331 = vlaneseq
    %v332 = vshrl.u32 %v331, 7
    %v333 = vsub.s32 0, %v332
    %v334 = vrot.slane %v44, %v333
    %v335 = vlaneseq
    %v336 = vshrl.u32 %v335, 7
    %v337 = vsub.s32 1, %v336
    %v338 = vrot.slane %v44, %v337
    %v373 = vunpack.c.l.b16 %v298
    %v374 = vunpack.c.h.b16 %v298
    %v375 = vunpack.c.l.b16 %v299
    %v376 = vunpack.c.h.b16 %v299
    %v377 = vunpack.c.l.b16 %v300
    %v378 = vunpack.c.h.b16 %v300
    %v379 = vunpack.c.l.b16 %v301
    %v380 = vunpack.c.h.b16 %v301
    %v381 = vunpack.c.l.b16 %v302
    %v382 = vunpack.c.h.b16 %v302
    %v383 = vunpack.c.l.b16 %v303
    %v384 = vunpack.c.h.b16 %v303
    %v385 = vunpack.c.l.b16 %v304
    %v386 = vunpack.c.h.b16 %v304
    %v387 = vunpack.c.l.b16 %v305
    %v388 = vunpack.c.h.b16 %v305
    %v389 = vunpack.c.l.b16 %v306
    %v390 = vunpack.c.h.b16 %v306
    %v391 = vunpack.c.l.b16 %v307
    %v392 = vunpack.c.h.b16 %v307
    %v393 = vunpack.c.l.b16 %v308
    %v394 = vunpack.c.h.b16 %v308
    %v395 = vunpack.c.l.b16 %v309
    %v396 = vunpack.c.h.b16 %v309
    %v397 = vunpack.c.l.b16 %v310
    %v398 = vunpack.c.h.b16 %v310
    %v399 = vunpack.c.l.b16 %v311
    %v400 = vunpack.c.h.b16 %v311
    %v401 = vunpack.c.l.b16 %v312
    %v402 = vunpack.c.h.b16 %v312
    %v403 = vunpack.c.l.b16 %v313
    %v404 = vunpack.c.h.b16 %v313
    %v405 = vunpack.c.l.b16 %v314
    %v406 = vunpack.c.h.b16 %v314
    %v407 = vunpack.c.l.b16 %v315
    %v408 = vunpack.c.h.b16 %v315
    %v409 = vunpack.c.l.b16 %v316
    %v410 = vunpack.c.h.b16 %v316
    %v411 = vunpack.c.l.b16 %v317
    %v412 = vunpack.c.h.b16 %v317
    %v413 = vunpack.c.l.b16 %v318
    %v414 = vunpack.c.h.b16 %v318
    %v415 = vunpack.c.l.b16 %v319
    %v416 = vunpack.c.h.b16 %v319
    %v417 = vunpack.c.l.b16 %v320
    %v418 = vunpack.c.h.b16 %v320
    %v419 = vunpack.c.l.b16 %v321
    %v420 = vunpack.c.h.b16 %v321
    %v421 = vunpack.c.l.b16 %v322
    %v422 = vunpack.c.h.b16 %v322
    %v423 = vunpack.c.l.b16 %v323
    %v424 = vunpack.c.h.b16 %v323
    %v425 = vunpack.c.l.b16 %v324
    %v426 = vunpack.c.h.b16 %v324
    %v427 = vunpack.c.l.b16 %v325
    %v428 = vunpack.c.h.b16 %v325
    %v429 = vunpack.c.l.b16 %v326
    %v430 = vunpack.c.h.b16 %v326
    %v431 = vunpack.c.l.b16 %v327
    %v432 = vunpack.c.h.b16 %v327
    %v433 = vunpack.c.l.b16 %v328
    %v434 = vunpack.c.h.b16 %v328
    %v435 = vunpack.c.l.b16 %v329
    %v436 = vunpack.c.h.b16 %v329
    %v437 = vpack.c.b16 %v375, %v373
    %v438 = vpack.c.b16 %v376, %v374
    %v439 = vpack.c.b16 %v379, %v377
    %v440 = vpack.c.b16 %v380, %v378
    %v441 = vpack.c.b16 %v383, %v381
    %v442 = vpack.c.b16 %v384, %v382
    %v443 = vpack.c.b16 %v387, %v385
    %v444 = vpack.c.b16 %v388, %v386
    %v445 = vpack.c.b16 %v391, %v389
    %v446 = vpack.c.b16 %v392, %v390
    %v447 = vpack.c.b16 %v395, %v393
    %v448 = vpack.c.b16 %v396, %v394
    %v449 = vpack.c.b16 %v399, %v397
    %v450 = vpack.c.b16 %v400, %v398
    %v451 = vpack.c.b16 %v403, %v401
    %v452 = vpack.c.b16 %v404, %v402
    %v453 = vpack.c.b16 %v407, %v405
    %v454 = vpack.c.b16 %v408, %v406
    %v455 = vpack.c.b16 %v411, %v409
    %v456 = vpack.c.b16 %v412, %v410
    %v457 = vpack.c.b16 %v415, %v413
    %v458 = vpack.c.b16 %v416, %v414
    %v459 = vpack.c.b16 %v419, %v417
    %v460 = vpack.c.b16 %v420, %v418
    %v461 = vpack.c.b16 %v423, %v421
    %v462 = vpack.c.b16 %v424, %v422
    %v463 = vpack.c.b16 %v427, %v425
    %v464 = vpack.c.b16 %v428, %v426
    %v465 = vpack.c.b16 %v431, %v429
    %v466 = vpack.c.b16 %v432, %v430
    %v467 = vpack.c.b16 %v435, %v433
    %v468 = vpack.c.b16 %v436, %v434
    %501 = vmatprep.subr.bf16.mxu0 %v452
    %502 = vmatpush1.bf16.msra.mxu0 %v451
    %503 = vmatprep.subr.bf16.mxu0 %v450
    %504 = vmatpush1.bf16.msra.mxu0 %v449
    %505 = vmatprep.subr.bf16.mxu0 %v448
    %506 = vmatpush1.bf16.msra.mxu0 %v447
    %507 = vmatprep.subr.bf16.mxu0 %v446
    %508 = vmatpush1.bf16.msra.mxu0 %v445
    %509 = vmatprep.subr.bf16.mxu0 %v444
    %510 = vmatpush1.bf16.msra.mxu0 %v443
    %511 = vmatprep.subr.bf16.mxu0 %v442
    %512 = vmatpush1.bf16.msra.mxu0 %v441
    %513 = vmatprep.subr.bf16.mxu0 %v440
    %514 = vmatpush1.bf16.msra.mxu0 %v439
    %515 = vmatprep.subr.bf16.mxu0 %v438
    %516 = vmatpush1.bf16.msra.mxu0 %v437
    %517 = vmatprep.subr.bf16.mxu0 %v468
    %518 = vmatpush2.bf16.msra.mxu0 %v467
    %519 = vmatprep.subr.bf16.mxu0 %v466
    %520 = vmatpush2.bf16.msra.mxu0 %v465
    %521 = vmatprep.subr.bf16.mxu0 %v464
    %522 = vmatpush2.bf16.msra.mxu0 %v463
    %523 = vmatprep.subr.bf16.mxu0 %v462
    %524 = vmatpush2.bf16.msra.mxu0 %v461
    %525 = vmatprep.subr.bf16.mxu0 %v460
    %526 = vmatpush2.bf16.msra.mxu0 %v459
    %527 = vmatprep.subr.bf16.mxu0 %v458
    %528 = vmatpush2.bf16.msra.mxu0 %v457
    %529 = vmatprep.subr.bf16.mxu0 %v456
    %530 = vmatpush2.bf16.msra.mxu0 %v455
    %531 = vmatprep.subr.bf16.mxu0 %v454
    %532 = vmatpush2.bf16.msra.mxu0 %v453
    %533 = vmatprep.mubr.bf16.mxu0 %v283
    %534 = vmatmul.mubr.bf16.gmra.mxu0 %v282
    %v535 = vpop.f32.mrf.mxu0
    %v536 = vadd.f32 %v334, %v535
    %v537 = vpop.f32.mrf.mxu0
    %v538 = vadd.f32 %v338, %v537
    %v539 = vpop.f32.mrf.mxu0
    %v540 = vadd.f32 %v334, %v539
    %v541 = vpop.f32.mrf.mxu0
    %v542 = vadd.f32 %v338, %v541
    %543 = vmatprep.mubr.bf16.mxu0 %v285
    %544 = vmatmul.mubr.bf16.gmra.mxu0 %v284
    %v545 = vpop.f32.mrf.mxu0
    %v546 = vadd.f32 %v334, %v545
    %v547 = vpop.f32.mrf.mxu0
    %v548 = vadd.f32 %v338, %v547
    %v549 = vpop.f32.mrf.mxu0
    %v550 = vadd.f32 %v334, %v549
    %v551 = vpop.f32.mrf.mxu0
    %v552 = vadd.f32 %v338, %v551
    %553 = vmatprep.mubr.bf16.mxu0 %v287
    %554 = vmatmul.mubr.bf16.gmra.mxu0 %v286
    %v555 = vpop.f32.mrf.mxu0
    %v556 = vadd.f32 %v334, %v555
    %v557 = vpop.f32.mrf.mxu0
    %v558 = vadd.f32 %v338, %v557
    %v559 = vpop.f32.mrf.mxu0
    %v560 = vadd.f32 %v334, %v559
    %v561 = vpop.f32.mrf.mxu0
    %v562 = vadd.f32 %v338, %v561
    %563 = vmatprep.mubr.bf16.mxu0 %v289
    %564 = vmatmul.mubr.bf16.gmra.mxu0 %v288
    %v565 = vpop.f32.mrf.mxu0
    %v566 = vadd.f32 %v334, %v565
    %v567 = vpop.f32.mrf.mxu0
    %v568 = vadd.f32 %v338, %v567
    %v569 = vpop.f32.mrf.mxu0
    %v570 = vadd.f32 %v334, %v569
    %v571 = vpop.f32.mrf.mxu0
    %v572 = vadd.f32 %v338, %v571
    %573 = vmatprep.mubr.bf16.mxu0 %v291
    %574 = vmatmul.mubr.bf16.gmra.mxu0 %v290
    %v575 = vpop.f32.mrf.mxu0
    %v576 = vadd.f32 %v334, %v575
    %v577 = vpop.f32.mrf.mxu0
    %v578 = vadd.f32 %v338, %v577
    %v579 = vpop.f32.mrf.mxu0
    %v580 = vadd.f32 %v334, %v579
    %v581 = vpop.f32.mrf.mxu0
    %v582 = vadd.f32 %v338, %v581
    %583 = vmatprep.mubr.bf16.mxu0 %v293
    %584 = vmatmul.mubr.bf16.gmra.mxu0 %v292
    %v585 = vpop.f32.mrf.mxu0
    %v586 = vadd.f32 %v334, %v585
    %v587 = vpop.f32.mrf.mxu0
    %v588 = vadd.f32 %v338, %v587
    %v589 = vpop.f32.mrf.mxu0
    %v590 = vadd.f32 %v334, %v589
    %v591 = vpop.f32.mrf.mxu0
    %v592 = vadd.f32 %v338, %v591
    %593 = vmatprep.mubr.bf16.mxu0 %v295
    %594 = vmatmul.mubr.bf16.gmra.mxu0 %v294
    %v595 = vpop.f32.mrf.mxu0
    %v596 = vadd.f32 %v334, %v595
    %v597 = vpop.f32.mrf.mxu0
    %v598 = vadd.f32 %v338, %v597
    %v599 = vpop.f32.mrf.mxu0
    %v600 = vadd.f32 %v334, %v599
    %v601 = vpop.f32.mrf.mxu0
    %v602 = vadd.f32 %v338, %v601
    %603 = vmatprep.mubr.bf16.mxu0 %v297
    %604 = vmatmul.mubr.bf16.gmra.mxu0 %v296
    %v605 = vpop.f32.mrf.mxu0
    %v606 = vadd.f32 %v334, %v605
    %v607 = vpop.f32.mrf.mxu0
    %v608 = vadd.f32 %v338, %v607
    %v609 = vpop.f32.mrf.mxu0
    %v610 = vadd.f32 %v334, %v609
    %v611 = vpop.f32.mrf.mxu0
    %v612 = vadd.f32 %v338, %v611
    %613 = vdwg.mxu0
    %v614 = vmax.f32 %v536, 0.0
    %v615 = vmax.f32 %v538, 0.0
    %v616 = vmax.f32 %v540, 0.0
    %v617 = vmax.f32 %v542, 0.0
    %v618 = vmax.f32 %v546, 0.0
    %v619 = vmax.f32 %v548, 0.0
    %v620 = vmax.f32 %v550, 0.0
    %v621 = vmax.f32 %v552, 0.0
    %v622 = vmax.f32 %v556, 0.0
    %v623 = vmax.f32 %v558, 0.0
    %v624 = vmax.f32 %v560, 0.0
    %v625 = vmax.f32 %v562, 0.0
    %v626 = vmax.f32 %v566, 0.0
    %v627 = vmax.f32 %v568, 0.0
    %v628 = vmax.f32 %v570, 0.0
    %v629 = vmax.f32 %v572, 0.0
    %v630 = vmax.f32 %v576, 0.0
    %v631 = vmax.f32 %v578, 0.0
    %v632 = vmax.f32 %v580, 0.0
    %v633 = vmax.f32 %v582, 0.0
    %v634 = vmax.f32 %v586, 0.0
    %v635 = vmax.f32 %v588, 0.0
    %v636 = vmax.f32 %v590, 0.0
    %v637 = vmax.f32 %v592, 0.0
    %v638 = vmax.f32 %v596, 0.0
    %v639 = vmax.f32 %v598, 0.0
    %v640 = vmax.f32 %v600, 0.0
    %v641 = vmax.f32 %v602, 0.0
    %v642 = vmax.f32 %v606, 0.0
    %v643 = vmax.f32 %v608, 0.0
    %v644 = vmax.f32 %v610, 0.0
    %v645 = vmax.f32 %v612, 0.0
    %v646 = vpack.c.bf16 %v616, %v614
    %v647 = vpack.c.bf16 %v617, %v615
    %v648 = vpack.c.bf16 %v620, %v618
    %v649 = vpack.c.bf16 %v621, %v619
    %v650 = vpack.c.bf16 %v624, %v622
    %v651 = vpack.c.bf16 %v625, %v623
    %v652 = vpack.c.bf16 %v628, %v626
    %v653 = vpack.c.bf16 %v629, %v627
    %v654 = vpack.c.bf16 %v632, %v630
    %v655 = vpack.c.bf16 %v633, %v631
    %v656 = vpack.c.bf16 %v636, %v634
    %v657 = vpack.c.bf16 %v637, %v635
    %v658 = vpack.c.bf16 %v640, %v638
    %v659 = vpack.c.bf16 %v641, %v639
    %v660 = vpack.c.bf16 %v644, %v642
    %v661 = vpack.c.bf16 %v645, %v643
    %662 = vmatprep.subr.bf16.mxu0 %v661
    %663 = vmatpush1.bf16.xpose.msra.mxu0 %v660
    %664 = vmatprep.subr.bf16.mxu0 %v659
    %665 = vmatpush1.bf16.xpose.msra.mxu0 %v658
    %666 = vmatprep.subr.bf16.mxu0 %v657
    %667 = vmatpush1.bf16.xpose.msra.mxu0 %v656
    %668 = vmatprep.subr.bf16.mxu0 %v655
    %669 = vmatpush1.bf16.xpose.msra.mxu0 %v654
    %670 = vmatprep.subr.bf16.mxu0 %v653
    %671 = vmatpush1.bf16.xpose.msra.mxu0 %v652
    %672 = vmatprep.subr.bf16.mxu0 %v651
    %673 = vmatpush1.bf16.xpose.msra.mxu0 %v650
    %674 = vmatprep.subr.bf16.mxu0 %v649
    %675 = vmatpush1.bf16.xpose.msra.mxu0 %v648
    %676 = vmatprep.subr.bf16.mxu0 %v647
    %677 = vmatpush1.bf16.xpose.msra.mxu0 %v646
    %678 = vmatprep.subr.bf16.mxu0 0
    %679 = vmatpush2.bf16.xpose.msra.mxu0 0
    %680 = vmatprep.subr.bf16.mxu0 0
    %681 = vmatpush2.bf16.xpose.msra.mxu0 0
    %682 = vmatprep.subr.bf16.mxu0 0
    %683 = vmatpush2.bf16.xpose.msra.mxu0 0
    %684 = vmatprep.subr.bf16.mxu0 0
    %685 = vmatpush2.bf16.xpose.msra.mxu0 0
    %686 = vmatprep.subr.bf16.mxu0 0
    %687 = vmatpush2.bf16.xpose.msra.mxu0 0
    %688 = vmatprep.subr.bf16.mxu0 0
    %689 = vmatpush2.bf16.xpose.msra.mxu0 0
    %690 = vmatprep.subr.bf16.mxu0 0
    %691 = vmatpush2.bf16.xpose.msra.mxu0 0
    %692 = vmatprep.subr.bf16.mxu0 0
    %693 = vmatpush2.bf16.xpose.msra.mxu0 0
    %694 = vmatprep.mubr.bf16.mxu0 %v59
    %695 = vmatmul.mubr.bf16.gmra.mxu0 %v58
    %v696 = vpop.f32.mrf.mxu0
    %v697 = vadd.f32 0.0, %v696
    %v698 = vpop.f32.mrf.mxu0
    %v699 = vpop.f32.mrf.mxu0
    %v700 = vpop.f32.mrf.mxu0
    %701 = vdwg.mxu0
    %v702 = vstv %s45
    %v703 = vadd.f32 %v697, %v702
    %704 = vst [vmem:[#allocation6] sm:$0x1] %v703
    // Predicated region
    $region34: #{tpu_custom_call.1} parent=1 // pred_check
      _
    $region35: #{tpu_custom_call.1} parent=1 // pred_check_branch
      %706 = sbr.rel (0) target = $region37
    $region36: #{tpu_custom_call.1} parent=1 // pred_region
      %s708 = ssub.s32 16, 16
      %709 = vsyncadd [#allocation5], %s708
      %s711 = sshll.u32 [#allocation6], 4
      %s712 = int_to_ptr.vmem [resolvable:$true] %s711
      %714 = dma.vmem_to_hbm [thread:$0]  %s712, 16, %s7, [#allocation5]
    $region37: #{tpu_custom_call.1} parent=1 // pred_fallthru
      _
    // Predicated region
    $region38: #{tpu_custom_call.1} parent=1 // pred_check
      _
    $region39: #{tpu_custom_call.1} parent=1 // pred_check_branch
      %716 = sbr.rel (0) target = $region41
    $region40: #{tpu_custom_call.1} parent=1 // pred_region
      %717 = dma.done [#allocation5], 16
    $region41: #{tpu_custom_call.1} parent=1 // pred_fallthru
      _
    %718 = vsyncpa [#allocation4], 1
    %719 = vsyncpa [#allocation5], 1

</llo_original>
